<compile_context>
chip_gen: v5e
topology: v5e:2x2
jax: 0.10.0
libtpu: 0.0.40
codegen_flags: <defaults>
</compile_context>

<pallas_src>
import jax
import jax.numpy as jnp
from jax.experimental import pallas as pl
from jax.experimental.pallas import tpu as pltpu


def _jkff_kernel(j_ref, k_ref, s_ref, q_ref, s_out_ref):
    """Q_new = (J & ~Q) | (~K & Q)  -- hold / set / reset / toggle."""
    j_on = j_ref[...] != 0          # J asserted
    k_off = k_ref[...] == 0         # K de-asserted
    s_on = s_ref[...] != 0          # current state (int8 0/1)
    new = jnp.logical_or(jnp.logical_and(j_on, jnp.logical_not(s_on)),
                         jnp.logical_and(k_off, s_on))
    q_ref[...] = new.astype(q_ref.dtype)          # float32 return (stype=float)
    s_out_ref[...] = new.astype(s_out_ref.dtype)  # int8 state carried onward


def _vmem_budget():
    """(vmem_limit_bytes, live_pipeline_budget_bytes) for the current chip."""
    try:
        cap = int(pltpu.get_tpu_info().vmem_capacity_bytes)
    except Exception:
        cap = 64 << 20                       # conservative (v7x-sized) fallback
    # Leave headroom for compiler scratch; never below the common 32 MiB default.
    vmem_limit = max(32 << 20, min(cap - (8 << 20), int(cap * 0.85)))
    # ~2-4 MiB per double-buffered stream saturates HBM; bigger only burns VMEM.
    live_budget = max(8 << 20, min(vmem_limit - (4 << 20), 24 << 20))
    return vmem_limit, live_budget


def _pick_block_rows(rows, cols, live_bytes_per_elem, live_budget, num_cores):
    """Largest 32-sublane-multiple row block fitting the live-VMEM budget."""
    max_rows = live_budget // (cols * live_bytes_per_elem)
    max_rows = max(32, (max_rows // 32) * 32)        # int8-friendly sublane multiple
    steps = pl.cdiv(rows, max_rows)
    if num_cores > 1:
        # Bias step count to a multiple of the TensorCore count so the
        # "parallel" axis gives every core work (v7x); no-op on 1-TC chips.
        steps = pl.cdiv(steps, num_cores) * num_cores
    block_rows = pl.cdiv(pl.cdiv(rows, steps), 32) * 32
    if block_rows >= rows:
        return rows                                  # one full-extent block (legal)
    return block_rows


def jkff_forward(J, K, state):
    """One JKFF update.

    J, K  : drive signals, any numeric dtype (tested against 0, like torch.eq).
    state : int8 current flip-flop state (0/1 values), same shape as J/K.
    Returns (Q, new_state): Q float32 (the module's return value) and new_state
    int8 (carry into the next call; aliased/donated back in place).
    """
    shape = J.shape
    n = J.size
    # TODO(synk): pad/handle shapes whose element count is not 128-aligned.
    assert n % 128 == 0, "total element count must be a multiple of 128"

    # Lane-dense slab: free row-major reshape; wide last dim keeps output
    # stores unmasked and makes tiling independent of the caller's shape.
    cols = 128
    for c in (4096, 2048, 1024, 512, 256):
        if n % c == 0:
            cols = c
            break
    rows = n // cols

    j2 = J.reshape(rows, cols)
    k2 = K.reshape(rows, cols)
    s2 = state.reshape(rows, cols)

    out_dtype = jnp.float32
    vmem_limit, live_budget = _vmem_budget()
    num_cores = getattr(jax.devices()[0], "num_cores", 1) or 1
    live_bytes_per_elem = 2 * (J.dtype.itemsize + K.dtype.itemsize
                               + 2 * state.dtype.itemsize
                               + jnp.dtype(out_dtype).itemsize)
    block_rows = _pick_block_rows(rows, cols, live_bytes_per_elem,
                                  live_budget, num_cores)
    grid = (pl.cdiv(rows, block_rows),)
    spec = pl.BlockSpec((block_rows, cols), lambda i: (i, 0))

    stream_bytes = n * (J.dtype.itemsize + K.dtype.itemsize
                        + 2 * state.dtype.itemsize
                        + jnp.dtype(out_dtype).itemsize)

    q2, s_new2 = pl.pallas_call(
        _jkff_kernel,
        out_shape=(jax.ShapeDtypeStruct((rows, cols), out_dtype),
                   jax.ShapeDtypeStruct((rows, cols), state.dtype)),
        grid=grid,
        in_specs=[spec, spec, spec],
        out_specs=(spec, spec),
        # state input (arg 2) aliases the int8 state output (output 1):
        # genuinely in place once the jit boundary donates the state buffer.
        input_output_aliases={2: 1},
        compiler_params=pltpu.CompilerParams(
            dimension_semantics=("parallel",),
            vmem_limit_bytes=int(vmem_limit),
        ),
        cost_estimate=pl.CostEstimate(
            flops=4 * n, transcendentals=0, bytes_accessed=int(stream_bytes)),
    )(j2, k2, s2)

    return q2.reshape(shape), s_new2.reshape(shape)


# Donate the state argument so the in-kernel aliasing is backed by real buffer
# donation (no hidden defensive copy) and each call is a single dispatch.
_jkff_step = jax.jit(jkff_forward, donate_argnums=(2,))


class JKFFPallas:
    """Stateful wrapper mirroring the PyTorch module (stype = float)."""

    def __init__(self, shape):
        # torch keeps zeros(1, int8) that broadcasts up on first use; the shape
        # is fixed here, so carry the full-shape int8 state explicitly.
        self.state = jnp.zeros(shape, dtype=jnp.int8)

    def __call__(self, J, K):
        q, self.state = _jkff_step(J, K, self.state)
        return q


def _reference_step(J, K, s):
    """Pure-JAX transcription of the PyTorch forward (int state, float return)."""
    j0 = (J == 0).astype(jnp.int32)
    j1 = 1 - j0
    k0 = (K == 0).astype(jnp.int32)
    k1 = 1 - k0
    new = (j0 & k0) * s + (j1 & k0) * 1 + (j0 & k1) * 0 + (j1 & k1) * (1 - s)
    return new.astype(jnp.float32), new


if __name__ == "__main__":
    key = jax.random.PRNGKey(0)
    R, C = 256, 256  # small, 128-aligned element count
    kJ1, kK1, kJ2, kK2 = jax.random.split(key, 4)

    # 0/1-valued float drive signals (exercise hold / set / reset / toggle).
    J1 = jax.random.bernoulli(kJ1, 0.5, (R, C)).astype(jnp.float32)
    K1 = jax.random.bernoulli(kK1, 0.5, (R, C)).astype(jnp.float32)
    J2 = jax.random.bernoulli(kJ2, 0.5, (R, C)).astype(jnp.float32)
    K2 = jax.random.bernoulli(kK2, 0.5, (R, C)).astype(jnp.float32)

    ff = JKFFPallas((R, C))
    q1 = ff(J1, K1)
    q2 = ff(J2, K2)
    q2 = jax.block_until_ready(q2)

    # Pure-JAX reference of the PyTorch semantics.
    ref_state = jnp.zeros((R, C), dtype=jnp.int32)
    r1, ref_state = _reference_step(J1, K1, ref_state)
    r2, ref_state = _reference_step(J2, K2, ref_state)

    assert q1.dtype == jnp.float32 and q2.dtype == jnp.float32
    assert jnp.array_equal(q1, r1), "mismatch on step 1"
    assert jnp.array_equal(q2, r2), "mismatch on step 2"
    assert ff.state.dtype == jnp.int8

    print("KERNEL_OK")
</pallas_src>

<mosaic_0001>
module attributes {stable_mosaic.version = 11 : i64} {
  func.func @_jkff_kernel(%arg0: i32, %arg1: memref<16x4096xf32, #tpu.memory_space<vmem>>, %arg2: memref<16x4096xf32, #tpu.memory_space<vmem>>, %arg3: memref<16x4096xi8, #tpu.memory_space<vmem>>, %arg4: memref<16x4096xf32, #tpu.memory_space<vmem>>, %arg5: memref<16x4096xi8, #tpu.memory_space<vmem>>) attributes {dimension_semantics = [#tpu.dimension_semantics<parallel>], iteration_bounds = array<i64: 1>, scalar_prefetch = 0 : i64, scratch_operands = 0 : i64, tpu.core_type = #tpu.core_type<tc>, window_params = [{transform_indices = @transform_0, window_bounds = array<i64: 16, 4096>}, {transform_indices = @transform_1, window_bounds = array<i64: 16, 4096>}, {transform_indices = @transform_2, window_bounds = array<i64: 16, 4096>}, {transform_indices = @transform_3, window_bounds = array<i64: 16, 4096>}, {transform_indices = @transform_4, window_bounds = array<i64: 16, 4096>}]} {
    %c0 = arith.constant 0 : index
    %c0_0 = arith.constant 0 : index
    %0 = vector.load %arg1[%c0, %c0_0] : memref<16x4096xf32, #tpu.memory_space<vmem>>, vector<16x4096xf32>
    %cst = arith.constant 0.000000e+00 : f32
    %1 = vector.broadcast %cst : f32 to vector<16x4096xf32>
    %2 = arith.cmpf one, %0, %1 : vector<16x4096xf32>
    %c0_1 = arith.constant 0 : index
    %c0_2 = arith.constant 0 : index
    %3 = vector.load %arg2[%c0_1, %c0_2] : memref<16x4096xf32, #tpu.memory_space<vmem>>, vector<16x4096xf32>
    %cst_3 = arith.constant 0.000000e+00 : f32
    %4 = vector.broadcast %cst_3 : f32 to vector<16x4096xf32>
    %5 = arith.cmpf oeq, %3, %4 : vector<16x4096xf32>
    %c0_4 = arith.constant 0 : index
    %c0_5 = arith.constant 0 : index
    %6 = vector.load %arg3[%c0_4, %c0_5] : memref<16x4096xi8, #tpu.memory_space<vmem>>, vector<16x4096xi8>
    %c0_i8 = arith.constant 0 : i8
    %7 = vector.broadcast %c0_i8 : i8 to vector<16x4096xi8>
    %8 = arith.cmpi ne, %6, %7 : vector<16x4096xi8>
    %cst_6 = arith.constant dense<true> : vector<16x4096xi1>
    %9 = arith.xori %8, %cst_6 : vector<16x4096xi1>
    %10 = arith.andi %2, %9 : vector<16x4096xi1>
    %11 = arith.andi %5, %8 : vector<16x4096xi1>
    %12 = arith.ori %10, %11 : vector<16x4096xi1>
    %13 = arith.extui %12 : vector<16x4096xi1> to vector<16x4096xi32>
    %14 = arith.sitofp %13 : vector<16x4096xi32> to vector<16x4096xf32>
    %c0_7 = arith.constant 0 : index
    %c0_8 = arith.constant 0 : index
    %15 = vector.load %arg4[%c0_7, %c0_8] : memref<16x4096xf32, #tpu.memory_space<vmem>>, vector<16x4096xf32>
    tpu.vector_store %arg4[%c0_7, %c0_8], %14 {strides = array<i32>} : memref<16x4096xf32, #tpu.memory_space<vmem>>, vector<16x4096xf32>,
    %16 = arith.extui %12 : vector<16x4096xi1> to vector<16x4096xi8>
    %c0_9 = arith.constant 0 : index
    %c0_10 = arith.constant 0 : index
    %17 = vector.load %arg5[%c0_9, %c0_10] : memref<16x4096xi8, #tpu.memory_space<vmem>>, vector<16x4096xi8>
    tpu.vector_store %arg5[%c0_9, %c0_10], %16 {strides = array<i32>} : memref<16x4096xi8, #tpu.memory_space<vmem>>, vector<16x4096xi8>,
    return
  }
  func.func @transform_0(%arg0: i32) -> (i32, i32) {
    %c0_i32 = arith.constant 0 : i32
    %c0_i32_0 = arith.constant 0 : i32
    return %arg0, %c0_i32 : i32, i32
  }
  func.func @transform_1(%arg0: i32) -> (i32, i32) {
    %c0_i32 = arith.constant 0 : i32
    %c0_i32_0 = arith.constant 0 : i32
    return %arg0, %c0_i32 : i32, i32
  }
  func.func @transform_2(%arg0: i32) -> (i32, i32) {
    %c0_i32 = arith.constant 0 : i32
    %c0_i32_0 = arith.constant 0 : i32
    return %arg0, %c0_i32 : i32, i32
  }
  func.func @transform_3(%arg0: i32) -> (i32, i32) {
    %c0_i32 = arith.constant 0 : i32
    %c0_i32_0 = arith.constant 0 : i32
    return %arg0, %c0_i32 : i32, i32
  }
  func.func @transform_4(%arg0: i32) -> (i32, i32) {
    %c0_i32 = arith.constant 0 : i32
    %c0_i32_0 = arith.constant 0 : i32
    return %arg0, %c0_i32 : i32, i32
  }
}

</mosaic_0001>

<llo_original>
// kernel: jkff_forward.1
$region0: #{jkff_forward.1}
  #allocation0 [shape = 'u32[]', space=smem, size = 0x4, offset = 0x4, fixed_abs, tag = 'smem constant byte address 0x4 - core index']
  #allocation1 [shape = 'u32[72,128]{1,0:T(1,128)}', space=vmem, size = 0x9000, scoped, tag = 'internal scratch']
  %s0 = inlined_call_operand.vmem [shape: f32[16,4096], index: 0, kind: input, shape index: {}]
  %s1 = inlined_call_operand.vmem [shape: f32[16,4096], index: 1, kind: input, shape index: {}]
  %s2 = inlined_call_operand.vmem [shape: s8[16,4096], index: 2, kind: input, shape index: {}, may-alias: {2,4}]
  %s3 = inlined_call_operand.vmem [shape: f32[16,4096], index: 3, kind: output, shape index: {0}]
  %s4 = inlined_call_operand.vmem [shape: s8[16,4096], index: 4, kind: output, shape index: {1}, may-alias: {2,4}]
  %5 = xla_tuple %s3, %s4
  %s6 = sld [smem:[#allocation0]]
  $region30: #{jkff_forward.1} parent=0
    _
  %s8 = ssub.s32 1, %s6
  %s9 = scalar_select 0, %s8, %s6
  // Predicated region
  $region2: #{jkff_forward.1} parent=0 // pred_check
    _
  $region3: #{jkff_forward.1} parent=0 // pred_check_branch
    %11 = sbr.rel (0) target = $region5
  $region4: #{jkff_forward.1} parent=0 // pred_region
    _
  $region5: #{jkff_forward.1} parent=0 // pred_fallthru
    _
  // Predicated region
  $region6: #{jkff_forward.1} parent=0 // pred_check
    _
  $region7: #{jkff_forward.1} parent=0 // pred_check_branch
    %13 = sbr.rel (0) target = $region9
  $region8: #{jkff_forward.1} parent=0 // pred_region
    _
  $region9: #{jkff_forward.1} parent=0 // pred_fallthru
    _
  // Predicated region
  $region10: #{jkff_forward.1} parent=0 // pred_check
    _
  $region11: #{jkff_forward.1} parent=0 // pred_check_branch
    %15 = sbr.rel (0) target = $region13
  $region12: #{jkff_forward.1} parent=0 // pred_region
    _
  $region13: #{jkff_forward.1} parent=0 // pred_fallthru
    _
  %v18 = vld [vmem:[%s0] sm:$0xff]
  %v19 = vld [vmem:[%s0 + $0x8] sm:$0xff]
  %v20 = vld [vmem:[%s0 + $0x10] sm:$0xff]
  %v21 = vld [vmem:[%s0 + $0x18] sm:$0xff]
  %v22 = vld [vmem:[%s0 + $0x20] sm:$0xff]
  %v23 = vld [vmem:[%s0 + $0x28] sm:$0xff]
  %v24 = vld [vmem:[%s0 + $0x30] sm:$0xff]
  %v25 = vld [vmem:[%s0 + $0x38] sm:$0xff]
  %v26 = vld [vmem:[%s0 + $0x40] sm:$0xff]
  %v27 = vld [vmem:[%s0 + $0x48] sm:$0xff]
  %v28 = vld [vmem:[%s0 + $0x50] sm:$0xff]
  %v29 = vld [vmem:[%s0 + $0x58] sm:$0xff]
  %v30 = vld [vmem:[%s0 + $0x60] sm:$0xff]
  %v31 = vld [vmem:[%s0 + $0x68] sm:$0xff]
  %v32 = vld [vmem:[%s0 + $0x70] sm:$0xff]
  %v33 = vld [vmem:[%s0 + $0x78] sm:$0xff]
  %v34 = vld [vmem:[%s0 + $0x80] sm:$0xff]
  %v35 = vld [vmem:[%s0 + $0x88] sm:$0xff]
  %v36 = vld [vmem:[%s0 + $0x90] sm:$0xff]
  %v37 = vld [vmem:[%s0 + $0x98] sm:$0xff]
  %v38 = vld [vmem:[%s0 + $0xa0] sm:$0xff]
  %v39 = vld [vmem:[%s0 + $0xa8] sm:$0xff]
  %v40 = vld [vmem:[%s0 + $0xb0] sm:$0xff]
  %v41 = vld [vmem:[%s0 + $0xb8] sm:$0xff]
  %v42 = vld [vmem:[%s0 + $0xc0] sm:$0xff]
  %v43 = vld [vmem:[%s0 + $0xc8] sm:$0xff]
  %v44 = vld [vmem:[%s0 + $0xd0] sm:$0xff]
  %v45 = vld [vmem:[%s0 + $0xd8] sm:$0xff]
  %v46 = vld [vmem:[%s0 + $0xe0] sm:$0xff]
  %v47 = vld [vmem:[%s0 + $0xe8] sm:$0xff]
  %v48 = vld [vmem:[%s0 + $0xf0] sm:$0xff]
  %v49 = vld [vmem:[%s0 + $0xf8] sm:$0xff]
  %v50 = vld [vmem:[%s0 + $0x100] sm:$0xff]
  %v51 = vld [vmem:[%s0 + $0x108] sm:$0xff]
  %v52 = vld [vmem:[%s0 + $0x110] sm:$0xff]
  %v53 = vld [vmem:[%s0 + $0x118] sm:$0xff]
  %v54 = vld [vmem:[%s0 + $0x120] sm:$0xff]
  %v55 = vld [vmem:[%s0 + $0x128] sm:$0xff]
  %v56 = vld [vmem:[%s0 + $0x130] sm:$0xff]
  %v57 = vld [vmem:[%s0 + $0x138] sm:$0xff]
  %v58 = vld [vmem:[%s0 + $0x140] sm:$0xff]
  %v59 = vld [vmem:[%s0 + $0x148] sm:$0xff]
  %v60 = vld [vmem:[%s0 + $0x150] sm:$0xff]
  %v61 = vld [vmem:[%s0 + $0x158] sm:$0xff]
  %v62 = vld [vmem:[%s0 + $0x160] sm:$0xff]
  %v63 = vld [vmem:[%s0 + $0x168] sm:$0xff]
  %v64 = vld [vmem:[%s0 + $0x170] sm:$0xff]
  %v65 = vld [vmem:[%s0 + $0x178] sm:$0xff]
  %v66 = vld [vmem:[%s0 + $0x180] sm:$0xff]
  %v67 = vld [vmem:[%s0 + $0x188] sm:$0xff]
  %v68 = vld [vmem:[%s0 + $0x190] sm:$0xff]
  %v69 = vld [vmem:[%s0 + $0x198] sm:$0xff]
  %v70 = vld [vmem:[%s0 + $0x1a0] sm:$0xff]
  %v71 = vld [vmem:[%s0 + $0x1a8] sm:$0xff]
  %v72 = vld [vmem:[%s0 + $0x1b0] sm:$0xff]
  %v73 = vld [vmem:[%s0 + $0x1b8] sm:$0xff]
  %v74 = vld [vmem:[%s0 + $0x1c0] sm:$0xff]
  %v75 = vld [vmem:[%s0 + $0x1c8] sm:$0xff]
  %v76 = vld [vmem:[%s0 + $0x1d0] sm:$0xff]
  %v77 = vld [vmem:[%s0 + $0x1d8] sm:$0xff]
  %v78 = vld [vmem:[%s0 + $0x1e0] sm:$0xff]
  %v79 = vld [vmem:[%s0 + $0x1e8] sm:$0xff]
  %v80 = vld [vmem:[%s0 + $0x1f0] sm:$0xff]
  %v81 = vld [vmem:[%s0 + $0x1f8] sm:$0xff]
  %vm82 = vcmp.ne.f32.partialorder %v18, 0.0
  %vm83 = vcmp.ne.f32.partialorder %v19, 0.0
  %vm84 = vcmp.ne.f32.partialorder %v20, 0.0
  %vm85 = vcmp.ne.f32.partialorder %v21, 0.0
  %vm86 = vcmp.ne.f32.partialorder %v22, 0.0
  %vm87 = vcmp.ne.f32.partialorder %v23, 0.0
  %vm88 = vcmp.ne.f32.partialorder %v24, 0.0
  %vm89 = vcmp.ne.f32.partialorder %v25, 0.0
  %vm90 = vcmp.ne.f32.partialorder %v26, 0.0
  %vm91 = vcmp.ne.f32.partialorder %v27, 0.0
  %vm92 = vcmp.ne.f32.partialorder %v28, 0.0
  %vm93 = vcmp.ne.f32.partialorder %v29, 0.0
  %vm94 = vcmp.ne.f32.partialorder %v30, 0.0
  %vm95 = vcmp.ne.f32.partialorder %v31, 0.0
  %vm96 = vcmp.ne.f32.partialorder %v32, 0.0
  %vm97 = vcmp.ne.f32.partialorder %v33, 0.0
  %vm98 = vcmp.ne.f32.partialorder %v34, 0.0
  %vm99 = vcmp.ne.f32.partialorder %v35, 0.0
  %vm100 = vcmp.ne.f32.partialorder %v36, 0.0
  %vm101 = vcmp.ne.f32.partialorder %v37, 0.0
  %vm102 = vcmp.ne.f32.partialorder %v38, 0.0
  %vm103 = vcmp.ne.f32.partialorder %v39, 0.0
  %vm104 = vcmp.ne.f32.partialorder %v40, 0.0
  %vm105 = vcmp.ne.f32.partialorder %v41, 0.0
  %vm106 = vcmp.ne.f32.partialorder %v42, 0.0
  %vm107 = vcmp.ne.f32.partialorder %v43, 0.0
  %vm108 = vcmp.ne.f32.partialorder %v44, 0.0
  %vm109 = vcmp.ne.f32.partialorder %v45, 0.0
  %vm110 = vcmp.ne.f32.partialorder %v46, 0.0
  %vm111 = vcmp.ne.f32.partialorder %v47, 0.0
  %vm112 = vcmp.ne.f32.partialorder %v48, 0.0
  %vm113 = vcmp.ne.f32.partialorder %v49, 0.0
  %vm114 = vcmp.ne.f32.partialorder %v50, 0.0
  %vm115 = vcmp.ne.f32.partialorder %v51, 0.0
  %vm116 = vcmp.ne.f32.partialorder %v52, 0.0
  %vm117 = vcmp.ne.f32.partialorder %v53, 0.0
  %vm118 = vcmp.ne.f32.partialorder %v54, 0.0
  %vm119 = vcmp.ne.f32.partialorder %v55, 0.0
  %vm120 = vcmp.ne.f32.partialorder %v56, 0.0
  %vm121 = vcmp.ne.f32.partialorder %v57, 0.0
  %vm122 = vcmp.ne.f32.partialorder %v58, 0.0
  %vm123 = vcmp.ne.f32.partialorder %v59, 0.0
  %vm124 = vcmp.ne.f32.partialorder %v60, 0.0
  %vm125 = vcmp.ne.f32.partialorder %v61, 0.0
  %vm126 = vcmp.ne.f32.partialorder %v62, 0.0
  %vm127 = vcmp.ne.f32.partialorder %v63, 0.0
  %vm128 = vcmp.ne.f32.partialorder %v64, 0.0
  %vm129 = vcmp.ne.f32.partialorder %v65, 0.0
  %vm130 = vcmp.ne.f32.partialorder %v66, 0.0
  %vm131 = vcmp.ne.f32.partialorder %v67, 0.0
  %vm132 = vcmp.ne.f32.partialorder %v68, 0.0
  %vm133 = vcmp.ne.f32.partialorder %v69, 0.0
  %vm134 = vcmp.ne.f32.partialorder %v70, 0.0
  %vm135 = vcmp.ne.f32.partialorder %v71, 0.0
  %vm136 = vcmp.ne.f32.partialorder %v72, 0.0
  %vm137 = vcmp.ne.f32.partialorder %v73, 0.0
  %vm138 = vcmp.ne.f32.partialorder %v74, 0.0
  %vm139 = vcmp.ne.f32.partialorder %v75, 0.0
  %vm140 = vcmp.ne.f32.partialorder %v76, 0.0
  %vm141 = vcmp.ne.f32.partialorder %v77, 0.0
  %vm142 = vcmp.ne.f32.partialorder %v78, 0.0
  %vm143 = vcmp.ne.f32.partialorder %v79, 0.0
  %vm144 = vcmp.ne.f32.partialorder %v80, 0.0
  %vm145 = vcmp.ne.f32.partialorder %v81, 0.0
  %v146 = vld [vmem:[%s1] sm:$0xff]
  %v147 = vld [vmem:[%s1 + $0x8] sm:$0xff]
  %v148 = vld [vmem:[%s1 + $0x10] sm:$0xff]
  %v149 = vld [vmem:[%s1 + $0x18] sm:$0xff]
  %v150 = vld [vmem:[%s1 + $0x20] sm:$0xff]
  %v151 = vld [vmem:[%s1 + $0x28] sm:$0xff]
  %v152 = vld [vmem:[%s1 + $0x30] sm:$0xff]
  %v153 = vld [vmem:[%s1 + $0x38] sm:$0xff]
  %v154 = vld [vmem:[%s1 + $0x40] sm:$0xff]
  %v155 = vld [vmem:[%s1 + $0x48] sm:$0xff]
  %v156 = vld [vmem:[%s1 + $0x50] sm:$0xff]
  %v157 = vld [vmem:[%s1 + $0x58] sm:$0xff]
  %v158 = vld [vmem:[%s1 + $0x60] sm:$0xff]
  %v159 = vld [vmem:[%s1 + $0x68] sm:$0xff]
  %v160 = vld [vmem:[%s1 + $0x70] sm:$0xff]
  %v161 = vld [vmem:[%s1 + $0x78] sm:$0xff]
  %v162 = vld [vmem:[%s1 + $0x80] sm:$0xff]
  %v163 = vld [vmem:[%s1 + $0x88] sm:$0xff]
  %v164 = vld [vmem:[%s1 + $0x90] sm:$0xff]
  %v165 = vld [vmem:[%s1 + $0x98] sm:$0xff]
  %v166 = vld [vmem:[%s1 + $0xa0] sm:$0xff]
  %v167 = vld [vmem:[%s1 + $0xa8] sm:$0xff]
  %v168 = vld [vmem:[%s1 + $0xb0] sm:$0xff]
  %v169 = vld [vmem:[%s1 + $0xb8] sm:$0xff]
  %v170 = vld [vmem:[%s1 + $0xc0] sm:$0xff]
  %v171 = vld [vmem:[%s1 + $0xc8] sm:$0xff]
  %v172 = vld [vmem:[%s1 + $0xd0] sm:$0xff]
  %v173 = vld [vmem:[%s1 + $0xd8] sm:$0xff]
  %v174 = vld [vmem:[%s1 + $0xe0] sm:$0xff]
  %v175 = vld [vmem:[%s1 + $0xe8] sm:$0xff]
  %v176 = vld [vmem:[%s1 + $0xf0] sm:$0xff]
  %v177 = vld [vmem:[%s1 + $0xf8] sm:$0xff]
  %v178 = vld [vmem:[%s1 + $0x100] sm:$0xff]
  %v179 = vld [vmem:[%s1 + $0x108] sm:$0xff]
  %v180 = vld [vmem:[%s1 + $0x110] sm:$0xff]
  %v181 = vld [vmem:[%s1 + $0x118] sm:$0xff]
  %v182 = vld [vmem:[%s1 + $0x120] sm:$0xff]
  %v183 = vld [vmem:[%s1 + $0x128] sm:$0xff]
  %v184 = vld [vmem:[%s1 + $0x130] sm:$0xff]
  %v185 = vld [vmem:[%s1 + $0x138] sm:$0xff]
  %v186 = vld [vmem:[%s1 + $0x140] sm:$0xff]
  %v187 = vld [vmem:[%s1 + $0x148] sm:$0xff]
  %v188 = vld [vmem:[%s1 + $0x150] sm:$0xff]
  %v189 = vld [vmem:[%s1 + $0x158] sm:$0xff]
  %v190 = vld [vmem:[%s1 + $0x160] sm:$0xff]
  %v191 = vld [vmem:[%s1 + $0x168] sm:$0xff]
  %v192 = vld [vmem:[%s1 + $0x170] sm:$0xff]
  %v193 = vld [vmem:[%s1 + $0x178] sm:$0xff]
  %v194 = vld [vmem:[%s1 + $0x180] sm:$0xff]
  %v195 = vld [vmem:[%s1 + $0x188] sm:$0xff]
  %v196 = vld [vmem:[%s1 + $0x190] sm:$0xff]
  %v197 = vld [vmem:[%s1 + $0x198] sm:$0xff]
  %v198 = vld [vmem:[%s1 + $0x1a0] sm:$0xff]
  %v199 = vld [vmem:[%s1 + $0x1a8] sm:$0xff]
  %v200 = vld [vmem:[%s1 + $0x1b0] sm:$0xff]
  %v201 = vld [vmem:[%s1 + $0x1b8] sm:$0xff]
  %v202 = vld [vmem:[%s1 + $0x1c0] sm:$0xff]
  %v203 = vld [vmem:[%s1 + $0x1c8] sm:$0xff]
  %v204 = vld [vmem:[%s1 + $0x1d0] sm:$0xff]
  %v205 = vld [vmem:[%s1 + $0x1d8] sm:$0xff]
  %v206 = vld [vmem:[%s1 + $0x1e0] sm:$0xff]
  %v207 = vld [vmem:[%s1 + $0x1e8] sm:$0xff]
  %v208 = vld [vmem:[%s1 + $0x1f0] sm:$0xff]
  %v209 = vld [vmem:[%s1 + $0x1f8] sm:$0xff]
  %vm210 = vcmp.eq.f32.partialorder %v146, 0.0
  %vm211 = vcmp.eq.f32.partialorder %v147, 0.0
  %vm212 = vcmp.eq.f32.partialorder %v148, 0.0
  %vm213 = vcmp.eq.f32.partialorder %v149, 0.0
  %vm214 = vcmp.eq.f32.partialorder %v150, 0.0
  %vm215 = vcmp.eq.f32.partialorder %v151, 0.0
  %vm216 = vcmp.eq.f32.partialorder %v152, 0.0
  %vm217 = vcmp.eq.f32.partialorder %v153, 0.0
  %vm218 = vcmp.eq.f32.partialorder %v154, 0.0
  %vm219 = vcmp.eq.f32.partialorder %v155, 0.0
  %vm220 = vcmp.eq.f32.partialorder %v156, 0.0
  %vm221 = vcmp.eq.f32.partialorder %v157, 0.0
  %vm222 = vcmp.eq.f32.partialorder %v158, 0.0
  %vm223 = vcmp.eq.f32.partialorder %v159, 0.0
  %vm224 = vcmp.eq.f32.partialorder %v160, 0.0
  %vm225 = vcmp.eq.f32.partialorder %v161, 0.0
  %vm226 = vcmp.eq.f32.partialorder %v162, 0.0
  %vm227 = vcmp.eq.f32.partialorder %v163, 0.0
  %vm228 = vcmp.eq.f32.partialorder %v164, 0.0
  %vm229 = vcmp.eq.f32.partialorder %v165, 0.0
  %vm230 = vcmp.eq.f32.partialorder %v166, 0.0
  %vm231 = vcmp.eq.f32.partialorder %v167, 0.0
  %vm232 = vcmp.eq.f32.partialorder %v168, 0.0
  %vm233 = vcmp.eq.f32.partialorder %v169, 0.0
  %vm234 = vcmp.eq.f32.partialorder %v170, 0.0
  %vm235 = vcmp.eq.f32.partialorder %v171, 0.0
  %vm236 = vcmp.eq.f32.partialorder %v172, 0.0
  %vm237 = vcmp.eq.f32.partialorder %v173, 0.0
  %vm238 = vcmp.eq.f32.partialorder %v174, 0.0
  %vm239 = vcmp.eq.f32.partialorder %v175, 0.0
  %vm240 = vcmp.eq.f32.partialorder %v176, 0.0
  %vm241 = vcmp.eq.f32.partialorder %v177, 0.0
  %vm242 = vcmp.eq.f32.partialorder %v178, 0.0
  %vm243 = vcmp.eq.f32.partialorder %v179, 0.0
  %vm244 = vcmp.eq.f32.partialorder %v180, 0.0
  %vm245 = vcmp.eq.f32.partialorder %v181, 0.0
  %vm246 = vcmp.eq.f32.partialorder %v182, 0.0
  %vm247 = vcmp.eq.f32.partialorder %v183, 0.0
  %vm248 = vcmp.eq.f32.partialorder %v184, 0.0
  %vm249 = vcmp.eq.f32.partialorder %v185, 0.0
  %vm250 = vcmp.eq.f32.partialorder %v186, 0.0
  %vm251 = vcmp.eq.f32.partialorder %v187, 0.0
  %vm252 = vcmp.eq.f32.partialorder %v188, 0.0
  %vm253 = vcmp.eq.f32.partialorder %v189, 0.0
  %vm254 = vcmp.eq.f32.partialorder %v190, 0.0
  %vm255 = vcmp.eq.f32.partialorder %v191, 0.0
  %vm256 = vcmp.eq.f32.partialorder %v192, 0.0
  %vm257 = vcmp.eq.f32.partialorder %v193, 0.0
  %vm258 = vcmp.eq.f32.partialorder %v194, 0.0
  %vm259 = vcmp.eq.f32.partialorder %v195, 0.0
  %vm260 = vcmp.eq.f32.partialorder %v196, 0.0
  %vm261 = vcmp.eq.f32.partialorder %v197, 0.0
  %vm262 = vcmp.eq.f32.partialorder %v198, 0.0
  %vm263 = vcmp.eq.f32.partialorder %v199, 0.0
  %vm264 = vcmp.eq.f32.partialorder %v200, 0.0
  %vm265 = vcmp.eq.f32.partialorder %v201, 0.0
  %vm266 = vcmp.eq.f32.partialorder %v202, 0.0
  %vm267 = vcmp.eq.f32.partialorder %v203, 0.0
  %vm268 = vcmp.eq.f32.partialorder %v204, 0.0
  %vm269 = vcmp.eq.f32.partialorder %v205, 0.0
  %vm270 = vcmp.eq.f32.partialorder %v206, 0.0
  %vm271 = vcmp.eq.f32.partialorder %v207, 0.0
  %vm272 = vcmp.eq.f32.partialorder %v208, 0.0
  %vm273 = vcmp.eq.f32.partialorder %v209, 0.0
  %v274 = vld [vmem:[%s2] sm:$0xff]
  %v275 = vld [vmem:[%s2 + $0x8] sm:$0xff]
  %v276 = vld [vmem:[%s2 + $0x10] sm:$0xff]
  %v277 = vld [vmem:[%s2 + $0x18] sm:$0xff]
  %v278 = vld [vmem:[%s2 + $0x20] sm:$0xff]
  %v279 = vld [vmem:[%s2 + $0x28] sm:$0xff]
  %v280 = vld [vmem:[%s2 + $0x30] sm:$0xff]
  %v281 = vld [vmem:[%s2 + $0x38] sm:$0xff]
  %v282 = vld [vmem:[%s2 + $0x40] sm:$0xff]
  %v283 = vld [vmem:[%s2 + $0x48] sm:$0xff]
  %v284 = vld [vmem:[%s2 + $0x50] sm:$0xff]
  %v285 = vld [vmem:[%s2 + $0x58] sm:$0xff]
  %v286 = vld [vmem:[%s2 + $0x60] sm:$0xff]
  %v287 = vld [vmem:[%s2 + $0x68] sm:$0xff]
  %v288 = vld [vmem:[%s2 + $0x70] sm:$0xff]
  %v289 = vld [vmem:[%s2 + $0x78] sm:$0xff]
  %vm290 = vnez %v274
  %vm291 = vnez %v275
  %vm292 = vnez %v276
  %vm293 = vnez %v277
  %vm294 = vnez %v278
  %vm295 = vnez %v279
  %vm296 = vnez %v280
  %vm297 = vnez %v281
  %vm298 = vnez %v282
  %vm299 = vnez %v283
  %vm300 = vnez %v284
  %vm301 = vnez %v285
  %vm302 = vnez %v286
  %vm303 = vnez %v287
  %vm304 = vnez %v288
  %vm305 = vnez %v289
  %vm306 = vmxor %vm290, 1
  %vm307 = vmxor %vm291, 1
  %vm308 = vmxor %vm292, 1
  %vm309 = vmxor %vm293, 1
  %vm310 = vmxor %vm294, 1
  %vm311 = vmxor %vm295, 1
  %vm312 = vmxor %vm296, 1
  %vm313 = vmxor %vm297, 1
  %vm314 = vmxor %vm298, 1
  %vm315 = vmxor %vm299, 1
  %vm316 = vmxor %vm300, 1
  %vm317 = vmxor %vm301, 1
  %vm318 = vmxor %vm302, 1
  %vm319 = vmxor %vm303, 1
  %vm320 = vmxor %vm304, 1
  %vm321 = vmxor %vm305, 1
  %v322 = vsel %vm306, 16843009, 0
  %v323 = vsel %vm307, 16843009, 0
  %v324 = vsel %vm308, 16843009, 0
  %v325 = vsel %vm309, 16843009, 0
  %v326 = vsel %vm310, 16843009, 0
  %v327 = vsel %vm311, 16843009, 0
  %v328 = vsel %vm312, 16843009, 0
  %v329 = vsel %vm313, 16843009, 0
  %v330 = vsel %vm314, 16843009, 0
  %v331 = vsel %vm315, 16843009, 0
  %v332 = vsel %vm316, 16843009, 0
  %v333 = vsel %vm317, 16843009, 0
  %v334 = vsel %vm318, 16843009, 0
  %v335 = vsel %vm319, 16843009, 0
  %v336 = vsel %vm320, 16843009, 0
  %v337 = vsel %vm321, 16843009, 0
  %v338 = vunpack.c.0.s8 %v322
  %v339 = vunpack.c.1.s8 %v322
  %v340 = vunpack.c.2.s8 %v322
  %v341 = vunpack.c.3.s8 %v322
  %v342 = vunpack.c.0.s8 %v323
  %v343 = vunpack.c.1.s8 %v323
  %v344 = vunpack.c.2.s8 %v323
  %v345 = vunpack.c.3.s8 %v323
  %v346 = vunpack.c.0.s8 %v324
  %v347 = vunpack.c.1.s8 %v324
  %v348 = vunpack.c.2.s8 %v324
  %v349 = vunpack.c.3.s8 %v324
  %v350 = vunpack.c.0.s8 %v325
  %v351 = vunpack.c.1.s8 %v325
  %v352 = vunpack.c.2.s8 %v325
  %v353 = vunpack.c.3.s8 %v325
  %v354 = vunpack.c.0.s8 %v326
  %v355 = vunpack.c.1.s8 %v326
  %v356 = vunpack.c.2.s8 %v326
  %v357 = vunpack.c.3.s8 %v326
  %v358 = vunpack.c.0.s8 %v327
  %v359 = vunpack.c.1.s8 %v327
  %v360 = vunpack.c.2.s8 %v327
  %v361 = vunpack.c.3.s8 %v327
  %v362 = vunpack.c.0.s8 %v328
  %v363 = vunpack.c.1.s8 %v328
  %v364 = vunpack.c.2.s8 %v328
  %v365 = vunpack.c.3.s8 %v328
  %v366 = vunpack.c.0.s8 %v329
  %v367 = vunpack.c.1.s8 %v329
  %v368 = vunpack.c.2.s8 %v329
  %v369 = vunpack.c.3.s8 %v329
  %v370 = vunpack.c.0.s8 %v330
  %v371 = vunpack.c.1.s8 %v330
  %v372 = vunpack.c.2.s8 %v330
  %v373 = vunpack.c.3.s8 %v330
  %v374 = vunpack.c.0.s8 %v331
  %v375 = vunpack.c.1.s8 %v331
  %v376 = vunpack.c.2.s8 %v331
  %v377 = vunpack.c.3.s8 %v331
  %v378 = vunpack.c.0.s8 %v332
  %v379 = vunpack.c.1.s8 %v332
  %v380 = vunpack.c.2.s8 %v332
  %v381 = vunpack.c.3.s8 %v332
  %v382 = vunpack.c.0.s8 %v333
  %v383 = vunpack.c.1.s8 %v333
  %v384 = vunpack.c.2.s8 %v333
  %v385 = vunpack.c.3.s8 %v333
  %v386 = vunpack.c.0.s8 %v334
  %v387 = vunpack.c.1.s8 %v334
  %v388 = vunpack.c.2.s8 %v334
  %v389 = vunpack.c.3.s8 %v334
  %v390 = vunpack.c.0.s8 %v335
  %v391 = vunpack.c.1.s8 %v335
  %v392 = vunpack.c.2.s8 %v335
  %v393 = vunpack.c.3.s8 %v335
  %v394 = vunpack.c.0.s8 %v336
  %v395 = vunpack.c.1.s8 %v336
  %v396 = vunpack.c.2.s8 %v336
  %v397 = vunpack.c.3.s8 %v336
  %v398 = vunpack.c.0.s8 %v337
  %v399 = vunpack.c.1.s8 %v337
  %v400 = vunpack.c.2.s8 %v337
  %v401 = vunpack.c.3.s8 %v337
  %vm402 = vcmp.ne.s32.totalorder %v338, 0
  %vm403 = vcmp.ne.s32.totalorder %v339, 0
  %vm404 = vcmp.ne.s32.totalorder %v340, 0
  %vm405 = vcmp.ne.s32.totalorder %v341, 0
  %vm406 = vcmp.ne.s32.totalorder %v342, 0
  %vm407 = vcmp.ne.s32.totalorder %v343, 0
  %vm408 = vcmp.ne.s32.totalorder %v344, 0
  %vm409 = vcmp.ne.s32.totalorder %v345, 0
  %vm410 = vcmp.ne.s32.totalorder %v346, 0
  %vm411 = vcmp.ne.s32.totalorder %v347, 0
  %vm412 = vcmp.ne.s32.totalorder %v348, 0
  %vm413 = vcmp.ne.s32.totalorder %v349, 0
  %vm414 = vcmp.ne.s32.totalorder %v350, 0
  %vm415 = vcmp.ne.s32.totalorder %v351, 0
  %vm416 = vcmp.ne.s32.totalorder %v352, 0
  %vm417 = vcmp.ne.s32.totalorder %v353, 0
  %vm418 = vcmp.ne.s32.totalorder %v354, 0
  %vm419 = vcmp.ne.s32.totalorder %v355, 0
  %vm420 = vcmp.ne.s32.totalorder %v356, 0
  %vm421 = vcmp.ne.s32.totalorder %v357, 0
  %vm422 = vcmp.ne.s32.totalorder %v358, 0
  %vm423 = vcmp.ne.s32.totalorder %v359, 0
  %vm424 = vcmp.ne.s32.totalorder %v360, 0
  %vm425 = vcmp.ne.s32.totalorder %v361, 0
  %vm426 = vcmp.ne.s32.totalorder %v362, 0
  %vm427 = vcmp.ne.s32.totalorder %v363, 0
  %vm428 = vcmp.ne.s32.totalorder %v364, 0
  %vm429 = vcmp.ne.s32.totalorder %v365, 0
  %vm430 = vcmp.ne.s32.totalorder %v366, 0
  %vm431 = vcmp.ne.s32.totalorder %v367, 0
  %vm432 = vcmp.ne.s32.totalorder %v368, 0
  %vm433 = vcmp.ne.s32.totalorder %v369, 0
  %vm434 = vcmp.ne.s32.totalorder %v370, 0
  %vm435 = vcmp.ne.s32.totalorder %v371, 0
  %vm436 = vcmp.ne.s32.totalorder %v372, 0
  %vm437 = vcmp.ne.s32.totalorder %v373, 0
  %vm438 = vcmp.ne.s32.totalorder %v374, 0
  %vm439 = vcmp.ne.s32.totalorder %v375, 0
  %vm440 = vcmp.ne.s32.totalorder %v376, 0
  %vm441 = vcmp.ne.s32.totalorder %v377, 0
  %vm442 = vcmp.ne.s32.totalorder %v378, 0
  %vm443 = vcmp.ne.s32.totalorder %v379, 0
  %vm444 = vcmp.ne.s32.totalorder %v380, 0
  %vm445 = vcmp.ne.s32.totalorder %v381, 0
  %vm446 = vcmp.ne.s32.totalorder %v382, 0
  %vm447 = vcmp.ne.s32.totalorder %v383, 0
  %vm448 = vcmp.ne.s32.totalorder %v384, 0
  %vm449 = vcmp.ne.s32.totalorder %v385, 0
  %vm450 = vcmp.ne.s32.totalorder %v386, 0
  %vm451 = vcmp.ne.s32.totalorder %v387, 0
  %vm452 = vcmp.ne.s32.totalorder %v388, 0
  %vm453 = vcmp.ne.s32.totalorder %v389, 0
  %vm454 = vcmp.ne.s32.totalorder %v390, 0
  %vm455 = vcmp.ne.s32.totalorder %v391, 0
  %vm456 = vcmp.ne.s32.totalorder %v392, 0
  %vm457 = vcmp.ne.s32.totalorder %v393, 0
  %vm458 = vcmp.ne.s32.totalorder %v394, 0
  %vm459 = vcmp.ne.s32.totalorder %v395, 0
  %vm460 = vcmp.ne.s32.totalorder %v396, 0
  %vm461 = vcmp.ne.s32.totalorder %v397, 0
  %vm462 = vcmp.ne.s32.totalorder %v398, 0
  %vm463 = vcmp.ne.s32.totalorder %v399, 0
  %vm464 = vcmp.ne.s32.totalorder %v400, 0
  %vm465 = vcmp.ne.s32.totalorder %v401, 0
  %vm466 = vmand %vm82, %vm402
  %vm467 = vmand %vm83, %vm403
  %vm468 = vmand %vm84, %vm404
  %vm469 = vmand %vm85, %vm405
  %vm470 = vmand %vm86, %vm406
  %vm471 = vmand %vm87, %vm407
  %vm472 = vmand %vm88, %vm408
  %vm473 = vmand %vm89, %vm409
  %vm474 = vmand %vm90, %vm410
  %vm475 = vmand %vm91, %vm411
  %vm476 = vmand %vm92, %vm412
  %vm477 = vmand %vm93, %vm413
  %vm478 = vmand %vm94, %vm414
  %vm479 = vmand %vm95, %vm415
  %vm480 = vmand %vm96, %vm416
  %vm481 = vmand %vm97, %vm417
  %vm482 = vmand %vm98, %vm418
  %vm483 = vmand %vm99, %vm419
  %vm484 = vmand %vm100, %vm420
  %vm485 = vmand %vm101, %vm421
  %vm486 = vmand %vm102, %vm422
  %vm487 = vmand %vm103, %vm423
  %vm488 = vmand %vm104, %vm424
  %vm489 = vmand %vm105, %vm425
  %vm490 = vmand %vm106, %vm426
  %vm491 = vmand %vm107, %vm427
  %vm492 = vmand %vm108, %vm428
  %vm493 = vmand %vm109, %vm429
  %vm494 = vmand %vm110, %vm430
  %vm495 = vmand %vm111, %vm431
  %vm496 = vmand %vm112, %vm432
  %vm497 = vmand %vm113, %vm433
  %vm498 = vmand %vm114, %vm434
  %vm499 = vmand %vm115, %vm435
  %vm500 = vmand %vm116, %vm436
  %vm501 = vmand %vm117, %vm437
  %vm502 = vmand %vm118, %vm438
  %vm503 = vmand %vm119, %vm439
  %vm504 = vmand %vm120, %vm440
  %vm505 = vmand %vm121, %vm441
  %vm506 = vmand %vm122, %vm442
  %vm507 = vmand %vm123, %vm443
  %vm508 = vmand %vm124, %vm444
  %vm509 = vmand %vm125, %vm445
  %vm510 = vmand %vm126, %vm446
  %vm511 = vmand %vm127, %vm447
  %vm512 = vmand %vm128, %vm448
  %vm513 = vmand %vm129, %vm449
  %vm514 = vmand %vm130, %vm450
  %vm515 = vmand %vm131, %vm451
  %vm516 = vmand %vm132, %vm452
  %vm517 = vmand %vm133, %vm453
  %vm518 = vmand %vm134, %vm454
  %vm519 = vmand %vm135, %vm455
  %vm520 = vmand %vm136, %vm456
  %vm521 = vmand %vm137, %vm457
  %vm522 = vmand %vm138, %vm458
  %vm523 = vmand %vm139, %vm459
  %vm524 = vmand %vm140, %vm460
  %vm525 = vmand %vm141, %vm461
  %vm526 = vmand %vm142, %vm462
  %vm527 = vmand %vm143, %vm463
  %vm528 = vmand %vm144, %vm464
  %vm529 = vmand %vm145, %vm465
  %v530 = vsel %vm290, 16843009, 0
  %v531 = vsel %vm291, 16843009, 0
  %v532 = vsel %vm292, 16843009, 0
  %v533 = vsel %vm293, 16843009, 0
  %v534 = vsel %vm294, 16843009, 0
  %v535 = vsel %vm295, 16843009, 0
  %v536 = vsel %vm296, 16843009, 0
  %v537 = vsel %vm297, 16843009, 0
  %v538 = vsel %vm298, 16843009, 0
  %v539 = vsel %vm299, 16843009, 0
  %v540 = vsel %vm300, 16843009, 0
  %v541 = vsel %vm301, 16843009, 0
  %v542 = vsel %vm302, 16843009, 0
  %v543 = vsel %vm303, 16843009, 0
  %v544 = vsel %vm304, 16843009, 0
  %v545 = vsel %vm305, 16843009, 0
  %v546 = vunpack.c.0.s8 %v530
  %v547 = vunpack.c.1.s8 %v530
  %v548 = vunpack.c.2.s8 %v530
  %v549 = vunpack.c.3.s8 %v530
  %v550 = vunpack.c.0.s8 %v531
  %v551 = vunpack.c.1.s8 %v531
  %v552 = vunpack.c.2.s8 %v531
  %v553 = vunpack.c.3.s8 %v531
  %v554 = vunpack.c.0.s8 %v532
  %v555 = vunpack.c.1.s8 %v532
  %v556 = vunpack.c.2.s8 %v532
  %v557 = vunpack.c.3.s8 %v532
  %v558 = vunpack.c.0.s8 %v533
  %v559 = vunpack.c.1.s8 %v533
  %v560 = vunpack.c.2.s8 %v533
  %v561 = vunpack.c.3.s8 %v533
  %v562 = vunpack.c.0.s8 %v534
  %v563 = vunpack.c.1.s8 %v534
  %v564 = vunpack.c.2.s8 %v534
  %v565 = vunpack.c.3.s8 %v534
  %v566 = vunpack.c.0.s8 %v535
  %v567 = vunpack.c.1.s8 %v535
  %v568 = vunpack.c.2.s8 %v535
  %v569 = vunpack.c.3.s8 %v535
  %v570 = vunpack.c.0.s8 %v536
  %v571 = vunpack.c.1.s8 %v536
  %v572 = vunpack.c.2.s8 %v536
  %v573 = vunpack.c.3.s8 %v536
  %v574 = vunpack.c.0.s8 %v537
  %v575 = vunpack.c.1.s8 %v537
  %v576 = vunpack.c.2.s8 %v537
  %v577 = vunpack.c.3.s8 %v537
  %v578 = vunpack.c.0.s8 %v538
  %v579 = vunpack.c.1.s8 %v538
  %v580 = vunpack.c.2.s8 %v538
  %v581 = vunpack.c.3.s8 %v538
  %v582 = vunpack.c.0.s8 %v539
  %v583 = vunpack.c.1.s8 %v539
  %v584 = vunpack.c.2.s8 %v539
  %v585 = vunpack.c.3.s8 %v539
  %v586 = vunpack.c.0.s8 %v540
  %v587 = vunpack.c.1.s8 %v540
  %v588 = vunpack.c.2.s8 %v540
  %v589 = vunpack.c.3.s8 %v540
  %v590 = vunpack.c.0.s8 %v541
  %v591 = vunpack.c.1.s8 %v541
  %v592 = vunpack.c.2.s8 %v541
  %v593 = vunpack.c.3.s8 %v541
  %v594 = vunpack.c.0.s8 %v542
  %v595 = vunpack.c.1.s8 %v542
  %v596 = vunpack.c.2.s8 %v542
  %v597 = vunpack.c.3.s8 %v542
  %v598 = vunpack.c.0.s8 %v543
  %v599 = vunpack.c.1.s8 %v543
  %v600 = vunpack.c.2.s8 %v543
  %v601 = vunpack.c.3.s8 %v543
  %v602 = vunpack.c.0.s8 %v544
  %v603 = vunpack.c.1.s8 %v544
  %v604 = vunpack.c.2.s8 %v544
  %v605 = vunpack.c.3.s8 %v544
  %v606 = vunpack.c.0.s8 %v545
  %v607 = vunpack.c.1.s8 %v545
  %v608 = vunpack.c.2.s8 %v545
  %v609 = vunpack.c.3.s8 %v545
  %vm610 = vcmp.ne.s32.totalorder %v546, 0
  %vm611 = vcmp.ne.s32.totalorder %v547, 0
  %vm612 = vcmp.ne.s32.totalorder %v548, 0
  %vm613 = vcmp.ne.s32.totalorder %v549, 0
  %vm614 = vcmp.ne.s32.totalorder %v550, 0
  %vm615 = vcmp.ne.s32.totalorder %v551, 0
  %vm616 = vcmp.ne.s32.totalorder %v552, 0
  %vm617 = vcmp.ne.s32.totalorder %v553, 0
  %vm618 = vcmp.ne.s32.totalorder %v554, 0
  %vm619 = vcmp.ne.s32.totalorder %v555, 0
  %vm620 = vcmp.ne.s32.totalorder %v556, 0
  %vm621 = vcmp.ne.s32.totalorder %v557, 0
  %vm622 = vcmp.ne.s32.totalorder %v558, 0
  %vm623 = vcmp.ne.s32.totalorder %v559, 0
  %vm624 = vcmp.ne.s32.totalorder %v560, 0
  %vm625 = vcmp.ne.s32.totalorder %v561, 0
  %vm626 = vcmp.ne.s32.totalorder %v562, 0
  %vm627 = vcmp.ne.s32.totalorder %v563, 0
  %vm628 = vcmp.ne.s32.totalorder %v564, 0
  %vm629 = vcmp.ne.s32.totalorder %v565, 0
  %vm630 = vcmp.ne.s32.totalorder %v566, 0
  %vm631 = vcmp.ne.s32.totalorder %v567, 0
  %vm632 = vcmp.ne.s32.totalorder %v568, 0
  %vm633 = vcmp.ne.s32.totalorder %v569, 0
  %vm634 = vcmp.ne.s32.totalorder %v570, 0
  %vm635 = vcmp.ne.s32.totalorder %v571, 0
  %vm636 = vcmp.ne.s32.totalorder %v572, 0
  %vm637 = vcmp.ne.s32.totalorder %v573, 0
  %vm638 = vcmp.ne.s32.totalorder %v574, 0
  %vm639 = vcmp.ne.s32.totalorder %v575, 0
  %vm640 = vcmp.ne.s32.totalorder %v576, 0
  %vm641 = vcmp.ne.s32.totalorder %v577, 0
  %vm642 = vcmp.ne.s32.totalorder %v578, 0
  %vm643 = vcmp.ne.s32.totalorder %v579, 0
  %vm644 = vcmp.ne.s32.totalorder %v580, 0
  %vm645 = vcmp.ne.s32.totalorder %v581, 0
  %vm646 = vcmp.ne.s32.totalorder %v582, 0
  %vm647 = vcmp.ne.s32.totalorder %v583, 0
  %vm648 = vcmp.ne.s32.totalorder %v584, 0
  %vm649 = vcmp.ne.s32.totalorder %v585, 0
  %vm650 = vcmp.ne.s32.totalorder %v586, 0
  %vm651 = vcmp.ne.s32.totalorder %v587, 0
  %vm652 = vcmp.ne.s32.totalorder %v588, 0
  %vm653 = vcmp.ne.s32.totalorder %v589, 0
  %vm654 = vcmp.ne.s32.totalorder %v590, 0
  %vm655 = vcmp.ne.s32.totalorder %v591, 0
  %vm656 = vcmp.ne.s32.totalorder %v592, 0
  %vm657 = vcmp.ne.s32.totalorder %v593, 0
  %vm658 = vcmp.ne.s32.totalorder %v594, 0
  %vm659 = vcmp.ne.s32.totalorder %v595, 0
  %vm660 = vcmp.ne.s32.totalorder %v596, 0
  %vm661 = vcmp.ne.s32.totalorder %v597, 0
  %vm662 = vcmp.ne.s32.totalorder %v598, 0
  %vm663 = vcmp.ne.s32.totalorder %v599, 0
  %vm664 = vcmp.ne.s32.totalorder %v600, 0
  %vm665 = vcmp.ne.s32.totalorder %v601, 0
  %vm666 = vcmp.ne.s32.totalorder %v602, 0
  %vm667 = vcmp.ne.s32.totalorder %v603, 0
  %vm668 = vcmp.ne.s32.totalorder %v604, 0
  %vm669 = vcmp.ne.s32.totalorder %v605, 0
  %vm670 = vcmp.ne.s32.totalorder %v606, 0
  %vm671 = vcmp.ne.s32.totalorder %v607, 0
  %vm672 = vcmp.ne.s32.totalorder %v608, 0
  %vm673 = vcmp.ne.s32.totalorder %v609, 0
  %vm674 = vmand %vm210, %vm610
  %vm675 = vmand %vm211, %vm611
  %vm676 = vmand %vm212, %vm612
  %vm677 = vmand %vm213, %vm613
  %vm678 = vmand %vm214, %vm614
  %vm679 = vmand %vm215, %vm615
  %vm680 = vmand %vm216, %vm616
  %vm681 = vmand %vm217, %vm617
  %vm682 = vmand %vm218, %vm618
  %vm683 = vmand %vm219, %vm619
  %vm684 = vmand %vm220, %vm620
  %vm685 = vmand %vm221, %vm621
  %vm686 = vmand %vm222, %vm622
  %vm687 = vmand %vm223, %vm623
  %vm688 = vmand %vm224, %vm624
  %vm689 = vmand %vm225, %vm625
  %vm690 = vmand %vm226, %vm626
  %vm691 = vmand %vm227, %vm627
  %vm692 = vmand %vm228, %vm628
  %vm693 = vmand %vm229, %vm629
  %vm694 = vmand %vm230, %vm630
  %vm695 = vmand %vm231, %vm631
  %vm696 = vmand %vm232, %vm632
  %vm697 = vmand %vm233, %vm633
  %vm698 = vmand %vm234, %vm634
  %vm699 = vmand %vm235, %vm635
  %vm700 = vmand %vm236, %vm636
  %vm701 = vmand %vm237, %vm637
  %vm702 = vmand %vm238, %vm638
  %vm703 = vmand %vm239, %vm639
  %vm704 = vmand %vm240, %vm640
  %vm705 = vmand %vm241, %vm641
  %vm706 = vmand %vm242, %vm642
  %vm707 = vmand %vm243, %vm643
  %vm708 = vmand %vm244, %vm644
  %vm709 = vmand %vm245, %vm645
  %vm710 = vmand %vm246, %vm646
  %vm711 = vmand %vm247, %vm647
  %vm712 = vmand %vm248, %vm648
  %vm713 = vmand %vm249, %vm649
  %vm714 = vmand %vm250, %vm650
  %vm715 = vmand %vm251, %vm651
  %vm716 = vmand %vm252, %vm652
  %vm717 = vmand %vm253, %vm653
  %vm718 = vmand %vm254, %vm654
  %vm719 = vmand %vm255, %vm655
  %vm720 = vmand %vm256, %vm656
  %vm721 = vmand %vm257, %vm657
  %vm722 = vmand %vm258, %vm658
  %vm723 = vmand %vm259, %vm659
  %vm724 = vmand %vm260, %vm660
  %vm725 = vmand %vm261, %vm661
  %vm726 = vmand %vm262, %vm662
  %vm727 = vmand %vm263, %vm663
  %vm728 = vmand %vm264, %vm664
  %vm729 = vmand %vm265, %vm665
  %vm730 = vmand %vm266, %vm666
  %vm731 = vmand %vm267, %vm667
  %vm732 = vmand %vm268, %vm668
  %vm733 = vmand %vm269, %vm669
  %vm734 = vmand %vm270, %vm670
  %vm735 = vmand %vm271, %vm671
  %vm736 = vmand %vm272, %vm672
  %vm737 = vmand %vm273, %vm673
  %vm738 = vmor %vm466, %vm674
  %vm739 = vmor %vm467, %vm675
  %vm740 = vmor %vm468, %vm676
  %vm741 = vmor %vm469, %vm677
  %vm742 = vmor %vm470, %vm678
  %vm743 = vmor %vm471, %vm679
  %vm744 = vmor %vm472, %vm680
  %vm745 = vmor %vm473, %vm681
  %vm746 = vmor %vm474, %vm682
  %vm747 = vmor %vm475, %vm683
  %vm748 = vmor %vm476, %vm684
  %vm749 = vmor %vm477, %vm685
  %vm750 = vmor %vm478, %vm686
  %vm751 = vmor %vm479, %vm687
  %vm752 = vmor %vm480, %vm688
  %vm753 = vmor %vm481, %vm689
  %vm754 = vmor %vm482, %vm690
  %vm755 = vmor %vm483, %vm691
  %vm756 = vmor %vm484, %vm692
  %vm757 = vmor %vm485, %vm693
  %vm758 = vmor %vm486, %vm694
  %vm759 = vmor %vm487, %vm695
  %vm760 = vmor %vm488, %vm696
  %vm761 = vmor %vm489, %vm697
  %vm762 = vmor %vm490, %vm698
  %vm763 = vmor %vm491, %vm699
  %vm764 = vmor %vm492, %vm700
  %vm765 = vmor %vm493, %vm701
  %vm766 = vmor %vm494, %vm702
  %vm767 = vmor %vm495, %vm703
  %vm768 = vmor %vm496, %vm704
  %vm769 = vmor %vm497, %vm705
  %vm770 = vmor %vm498, %vm706
  %vm771 = vmor %vm499, %vm707
  %vm772 = vmor %vm500, %vm708
  %vm773 = vmor %vm501, %vm709
  %vm774 = vmor %vm502, %vm710
  %vm775 = vmor %vm503, %vm711
  %vm776 = vmor %vm504, %vm712
  %vm777 = vmor %vm505, %vm713
  %vm778 = vmor %vm506, %vm714
  %vm779 = vmor %vm507, %vm715
  %vm780 = vmor %vm508, %vm716
  %vm781 = vmor %vm509, %vm717
  %vm782 = vmor %vm510, %vm718
  %vm783 = vmor %vm511, %vm719
  %vm784 = vmor %vm512, %vm720
  %vm785 = vmor %vm513, %vm721
  %vm786 = vmor %vm514, %vm722
  %vm787 = vmor %vm515, %vm723
  %vm788 = vmor %vm516, %vm724
  %vm789 = vmor %vm517, %vm725
  %vm790 = vmor %vm518, %vm726
  %vm791 = vmor %vm519, %vm727
  %vm792 = vmor %vm520, %vm728
  %vm793 = vmor %vm521, %vm729
  %vm794 = vmor %vm522, %vm730
  %vm795 = vmor %vm523, %vm731
  %vm796 = vmor %vm524, %vm732
  %vm797 = vmor %vm525, %vm733
  %vm798 = vmor %vm526, %vm734
  %vm799 = vmor %vm527, %vm735
  %vm800 = vmor %vm528, %vm736
  %vm801 = vmor %vm529, %vm737
  %v802 = vsel %vm738, 1, 0
  %v803 = vsel %vm739, 1, 0
  %v804 = vsel %vm740, 1, 0
  %v805 = vsel %vm741, 1, 0
  %v806 = vsel %vm742, 1, 0
  %v807 = vsel %vm743, 1, 0
  %v808 = vsel %vm744, 1, 0
  %v809 = vsel %vm745, 1, 0
  %v810 = vsel %vm746, 1, 0
  %v811 = vsel %vm747, 1, 0
  %v812 = vsel %vm748, 1, 0
  %v813 = vsel %vm749, 1, 0
  %v814 = vsel %vm750, 1, 0
  %v815 = vsel %vm751, 1, 0
  %v816 = vsel %vm752, 1, 0
  %v817 = vsel %vm753, 1, 0
  %v818 = vsel %vm754, 1, 0
  %v819 = vsel %vm755, 1, 0
  %v820 = vsel %vm756, 1, 0
  %v821 = vsel %vm757, 1, 0
  %v822 = vsel %vm758, 1, 0
  %v823 = vsel %vm759, 1, 0
  %v824 = vsel %vm760, 1, 0
  %v825 = vsel %vm761, 1, 0
  %v826 = vsel %vm762, 1, 0
  %v827 = vsel %vm763, 1, 0
  %v828 = vsel %vm764, 1, 0
  %v829 = vsel %vm765, 1, 0
  %v830 = vsel %vm766, 1, 0
  %v831 = vsel %vm767, 1, 0
  %v832 = vsel %vm768, 1, 0
  %v833 = vsel %vm769, 1, 0
  %v834 = vsel %vm770, 1, 0
  %v835 = vsel %vm771, 1, 0
  %v836 = vsel %vm772, 1, 0
  %v837 = vsel %vm773, 1, 0
  %v838 = vsel %vm774, 1, 0
  %v839 = vsel %vm775, 1, 0
  %v840 = vsel %vm776, 1, 0
  %v841 = vsel %vm777, 1, 0
  %v842 = vsel %vm778, 1, 0
  %v843 = vsel %vm779, 1, 0
  %v844 = vsel %vm780, 1, 0
  %v845 = vsel %vm781, 1, 0
  %v846 = vsel %vm782, 1, 0
  %v847 = vsel %vm783, 1, 0
  %v848 = vsel %vm784, 1, 0
  %v849 = vsel %vm785, 1, 0
  %v850 = vsel %vm786, 1, 0
  %v851 = vsel %vm787, 1, 0
  %v852 = vsel %vm788, 1, 0
  %v853 = vsel %vm789, 1, 0
  %v854 = vsel %vm790, 1, 0
  %v855 = vsel %vm791, 1, 0
  %v856 = vsel %vm792, 1, 0
  %v857 = vsel %vm793, 1, 0
  %v858 = vsel %vm794, 1, 0
  %v859 = vsel %vm795, 1, 0
  %v860 = vsel %vm796, 1, 0
  %v861 = vsel %vm797, 1, 0
  %v862 = vsel %vm798, 1, 0
  %v863 = vsel %vm799, 1, 0
  %v864 = vsel %vm800, 1, 0
  %v865 = vsel %vm801, 1, 0
  %v866 = vcvt.s32.f32 %v802
  %v867 = vcvt.s32.f32 %v803
  %v868 = vcvt.s32.f32 %v804
  %v869 = vcvt.s32.f32 %v805
  %v870 = vcvt.s32.f32 %v806
  %v871 = vcvt.s32.f32 %v807
  %v872 = vcvt.s32.f32 %v808
  %v873 = vcvt.s32.f32 %v809
  %v874 = vcvt.s32.f32 %v810
  %v875 = vcvt.s32.f32 %v811
  %v876 = vcvt.s32.f32 %v812
  %v877 = vcvt.s32.f32 %v813
  %v878 = vcvt.s32.f32 %v814
  %v879 = vcvt.s32.f32 %v815
  %v880 = vcvt.s32.f32 %v816
  %v881 = vcvt.s32.f32 %v817
  %v882 = vcvt.s32.f32 %v818
  %v883 = vcvt.s32.f32 %v819
  %v884 = vcvt.s32.f32 %v820
  %v885 = vcvt.s32.f32 %v821
  %v886 = vcvt.s32.f32 %v822
  %v887 = vcvt.s32.f32 %v823
  %v888 = vcvt.s32.f32 %v824
  %v889 = vcvt.s32.f32 %v825
  %v890 = vcvt.s32.f32 %v826
  %v891 = vcvt.s32.f32 %v827
  %v892 = vcvt.s32.f32 %v828
  %v893 = vcvt.s32.f32 %v829
  %v894 = vcvt.s32.f32 %v830
  %v895 = vcvt.s32.f32 %v831
  %v896 = vcvt.s32.f32 %v832
  %v897 = vcvt.s32.f32 %v833
  %v898 = vcvt.s32.f32 %v834
  %v899 = vcvt.s32.f32 %v835
  %v900 = vcvt.s32.f32 %v836
  %v901 = vcvt.s32.f32 %v837
  %v902 = vcvt.s32.f32 %v838
  %v903 = vcvt.s32.f32 %v839
  %v904 = vcvt.s32.f32 %v840
  %v905 = vcvt.s32.f32 %v841
  %v906 = vcvt.s32.f32 %v842
  %v907 = vcvt.s32.f32 %v843
  %v908 = vcvt.s32.f32 %v844
  %v909 = vcvt.s32.f32 %v845
  %v910 = vcvt.s32.f32 %v846
  %v911 = vcvt.s32.f32 %v847
  %v912 = vcvt.s32.f32 %v848
  %v913 = vcvt.s32.f32 %v849
  %v914 = vcvt.s32.f32 %v850
  %v915 = vcvt.s32.f32 %v851
  %v916 = vcvt.s32.f32 %v852
  %v917 = vcvt.s32.f32 %v853
  %v918 = vcvt.s32.f32 %v854
  %v919 = vcvt.s32.f32 %v855
  %v920 = vcvt.s32.f32 %v856
  %v921 = vcvt.s32.f32 %v857
  %v922 = vcvt.s32.f32 %v858
  %v923 = vcvt.s32.f32 %v859
  %v924 = vcvt.s32.f32 %v860
  %v925 = vcvt.s32.f32 %v861
  %v926 = vcvt.s32.f32 %v862
  %v927 = vcvt.s32.f32 %v863
  %v928 = vcvt.s32.f32 %v864
  %v929 = vcvt.s32.f32 %v865
  %930 = vst [vmem:[%s3] sm:$0xff] %v866
  %931 = vst [vmem:[%s3 + $0x8] sm:$0xff] %v867
  %932 = vst [vmem:[%s3 + $0x10] sm:$0xff] %v868
  %933 = vst [vmem:[%s3 + $0x18] sm:$0xff] %v869
  %934 = vst [vmem:[%s3 + $0x20] sm:$0xff] %v870
  %935 = vst [vmem:[%s3 + $0x28] sm:$0xff] %v871
  %936 = vst [vmem:[%s3 + $0x30] sm:$0xff] %v872
  %937 = vst [vmem:[%s3 + $0x38] sm:$0xff] %v873
  %938 = vst [vmem:[%s3 + $0x40] sm:$0xff] %v874
  %939 = vst [vmem:[%s3 + $0x48] sm:$0xff] %v875
  %940 = vst [vmem:[%s3 + $0x50] sm:$0xff] %v876
  %941 = vst [vmem:[%s3 + $0x58] sm:$0xff] %v877
  %942 = vst [vmem:[%s3 + $0x60] sm:$0xff] %v878
  %943 = vst [vmem:[%s3 + $0x68] sm:$0xff] %v879
  %944 = vst [vmem:[%s3 + $0x70] sm:$0xff] %v880
  %945 = vst [vmem:[%s3 + $0x78] sm:$0xff] %v881
  %946 = vst [vmem:[%s3 + $0x80] sm:$0xff] %v882
  %947 = vst [vmem:[%s3 + $0x88] sm:$0xff] %v883
  %948 = vst [vmem:[%s3 + $0x90] sm:$0xff] %v884
  %949 = vst [vmem:[%s3 + $0x98] sm:$0xff] %v885
  %950 = vst [vmem:[%s3 + $0xa0] sm:$0xff] %v886
  %951 = vst [vmem:[%s3 + $0xa8] sm:$0xff] %v887
  %952 = vst [vmem:[%s3 + $0xb0] sm:$0xff] %v888
  %953 = vst [vmem:[%s3 + $0xb8] sm:$0xff] %v889
  %954 = vst [vmem:[%s3 + $0xc0] sm:$0xff] %v890
  %955 = vst [vmem:[%s3 + $0xc8] sm:$0xff] %v891
  %956 = vst [vmem:[%s3 + $0xd0] sm:$0xff] %v892
  %957 = vst [vmem:[%s3 + $0xd8] sm:$0xff] %v893
  %958 = vst [vmem:[%s3 + $0xe0] sm:$0xff] %v894
  %959 = vst [vmem:[%s3 + $0xe8] sm:$0xff] %v895
  %960 = vst [vmem:[%s3 + $0xf0] sm:$0xff] %v896
  %961 = vst [vmem:[%s3 + $0xf8] sm:$0xff] %v897
  %962 = vst [vmem:[%s3 + $0x100] sm:$0xff] %v898
  %963 = vst [vmem:[%s3 + $0x108] sm:$0xff] %v899
  %964 = vst [vmem:[%s3 + $0x110] sm:$0xff] %v900
  %965 = vst [vmem:[%s3 + $0x118] sm:$0xff] %v901
  %966 = vst [vmem:[%s3 + $0x120] sm:$0xff] %v902
  %967 = vst [vmem:[%s3 + $0x128] sm:$0xff] %v903
  %968 = vst [vmem:[%s3 + $0x130] sm:$0xff] %v904
  %969 = vst [vmem:[%s3 + $0x138] sm:$0xff] %v905
  %970 = vst [vmem:[%s3 + $0x140] sm:$0xff] %v906
  %971 = vst [vmem:[%s3 + $0x148] sm:$0xff] %v907
  %972 = vst [vmem:[%s3 + $0x150] sm:$0xff] %v908
  %973 = vst [vmem:[%s3 + $0x158] sm:$0xff] %v909
  %974 = vst [vmem:[%s3 + $0x160] sm:$0xff] %v910
  %975 = vst [vmem:[%s3 + $0x168] sm:$0xff] %v911
  %976 = vst [vmem:[%s3 + $0x170] sm:$0xff] %v912
  %977 = vst [vmem:[%s3 + $0x178] sm:$0xff] %v913
  %978 = vst [vmem:[%s3 + $0x180] sm:$0xff] %v914
  %979 = vst [vmem:[%s3 + $0x188] sm:$0xff] %v915
  %980 = vst [vmem:[%s3 + $0x190] sm:$0xff] %v916
  %981 = vst [vmem:[%s3 + $0x198] sm:$0xff] %v917
  %982 = vst [vmem:[%s3 + $0x1a0] sm:$0xff] %v918
  %983 = vst [vmem:[%s3 + $0x1a8] sm:$0xff] %v919
  %984 = vst [vmem:[%s3 + $0x1b0] sm:$0xff] %v920
  %985 = vst [vmem:[%s3 + $0x1b8] sm:$0xff] %v921
  %986 = vst [vmem:[%s3 + $0x1c0] sm:$0xff] %v922
  %987 = vst [vmem:[%s3 + $0x1c8] sm:$0xff] %v923
  %988 = vst [vmem:[%s3 + $0x1d0] sm:$0xff] %v924
  %989 = vst [vmem:[%s3 + $0x1d8] sm:$0xff] %v925
  %990 = vst [vmem:[%s3 + $0x1e0] sm:$0xff] %v926
  %991 = vst [vmem:[%s3 + $0x1e8] sm:$0xff] %v927
  %992 = vst [vmem:[%s3 + $0x1f0] sm:$0xff] %v928
  %993 = vst [vmem:[%s3 + $0x1f8] sm:$0xff] %v929
  %vm994 = vmpackc.low %vm770, %vm738
  %v995 = vsel %vm994, 16711935, 0
  %v996 = vsel %vm994, 16711935, 0
  %v997 = vpack.c.b8 %v996, %v995
  %vm998 = vnez %v997
  %vm999 = vmpackc.low %vm771, %vm739
  %v1000 = vsel %vm999, 16711935, 0
  %v1001 = vsel %vm999, 16711935, 0
  %v1002 = vpack.c.b8 %v1001, %v1000
  %vm1003 = vnez %v1002
  %vm1004 = vmpackc.low %vm772, %vm740
  %v1005 = vsel %vm1004, 16711935, 0
  %v1006 = vsel %vm1004, 16711935, 0
  %v1007 = vpack.c.b8 %v1006, %v1005
  %vm1008 = vnez %v1007
  %vm1009 = vmpackc.low %vm773, %vm741
  %v1010 = vsel %vm1009, 16711935, 0
  %v1011 = vsel %vm1009, 16711935, 0
  %v1012 = vpack.c.b8 %v1011, %v1010
  %vm1013 = vnez %v1012
  %vm1014 = vmpackc.low %vm774, %vm742
  %v1015 = vsel %vm1014, 16711935, 0
  %v1016 = vsel %vm1014, 16711935, 0
  %v1017 = vpack.c.b8 %v1016, %v1015
  %vm1018 = vnez %v1017
  %vm1019 = vmpackc.low %vm775, %vm743
  %v1020 = vsel %vm1019, 16711935, 0
  %v1021 = vsel %vm1019, 16711935, 0
  %v1022 = vpack.c.b8 %v1021, %v1020
  %vm1023 = vnez %v1022
  %vm1024 = vmpackc.low %vm776, %vm744
  %v1025 = vsel %vm1024, 16711935, 0
  %v1026 = vsel %vm1024, 16711935, 0
  %v1027 = vpack.c.b8 %v1026, %v1025
  %vm1028 = vnez %v1027
  %vm1029 = vmpackc.low %vm777, %vm745
  %v1030 = vsel %vm1029, 16711935, 0
  %v1031 = vsel %vm1029, 16711935, 0
  %v1032 = vpack.c.b8 %v1031, %v1030
  %vm1033 = vnez %v1032
  %vm1034 = vmpackc.low %vm778, %vm746
  %v1035 = vsel %vm1034, 16711935, 0
  %v1036 = vsel %vm1034, 16711935, 0
  %v1037 = vpack.c.b8 %v1036, %v1035
  %vm1038 = vnez %v1037
  %vm1039 = vmpackc.low %vm779, %vm747
  %v1040 = vsel %vm1039, 16711935, 0
  %v1041 = vsel %vm1039, 16711935, 0
  %v1042 = vpack.c.b8 %v1041, %v1040
  %vm1043 = vnez %v1042
  %vm1044 = vmpackc.low %vm780, %vm748
  %v1045 = vsel %vm1044, 16711935, 0
  %v1046 = vsel %vm1044, 16711935, 0
  %v1047 = vpack.c.b8 %v1046, %v1045
  %vm1048 = vnez %v1047
  %vm1049 = vmpackc.low %vm781, %vm749
  %v1050 = vsel %vm1049, 16711935, 0
  %v1051 = vsel %vm1049, 16711935, 0
  %v1052 = vpack.c.b8 %v1051, %v1050
  %vm1053 = vnez %v1052
  %vm1054 = vmpackc.low %vm782, %vm750
  %v1055 = vsel %vm1054, 16711935, 0
  %v1056 = vsel %vm1054, 16711935, 0
  %v1057 = vpack.c.b8 %v1056, %v1055
  %vm1058 = vnez %v1057
  %vm1059 = vmpackc.low %vm783, %vm751
  %v1060 = vsel %vm1059, 16711935, 0
  %v1061 = vsel %vm1059, 16711935, 0
  %v1062 = vpack.c.b8 %v1061, %v1060
  %vm1063 = vnez %v1062
  %vm1064 = vmpackc.low %vm784, %vm752
  %v1065 = vsel %vm1064, 16711935, 0
  %v1066 = vsel %vm1064, 16711935, 0
  %v1067 = vpack.c.b8 %v1066, %v1065
  %vm1068 = vnez %v1067
  %vm1069 = vmpackc.low %vm785, %vm753
  %v1070 = vsel %vm1069, 16711935, 0
  %v1071 = vsel %vm1069, 16711935, 0
  %v1072 = vpack.c.b8 %v1071, %v1070
  %vm1073 = vnez %v1072
  %vm1074 = vmpackc.low %vm786, %vm754
  %v1075 = vsel %vm1074, 16711935, 0
  %v1076 = vsel %vm1074, 16711935, 0
  %v1077 = vpack.c.b8 %v1076, %v1075
  %vm1078 = vnez %v1077
  %vm1079 = vmpackc.low %vm787, %vm755
  %v1080 = vsel %vm1079, 16711935, 0
  %v1081 = vsel %vm1079, 16711935, 0
  %v1082 = vpack.c.b8 %v1081, %v1080
  %vm1083 = vnez %v1082
  %vm1084 = vmpackc.low %vm788, %vm756
  %v1085 = vsel %vm1084, 16711935, 0
  %v1086 = vsel %vm1084, 16711935, 0
  %v1087 = vpack.c.b8 %v1086, %v1085
  %vm1088 = vnez %v1087
  %vm1089 = vmpackc.low %vm789, %vm757
  %v1090 = vsel %vm1089, 16711935, 0
  %v1091 = vsel %vm1089, 16711935, 0
  %v1092 = vpack.c.b8 %v1091, %v1090
  %vm1093 = vnez %v1092
  %vm1094 = vmpackc.low %vm790, %vm758
  %v1095 = vsel %vm1094, 16711935, 0
  %v1096 = vsel %vm1094, 16711935, 0
  %v1097 = vpack.c.b8 %v1096, %v1095
  %vm1098 = vnez %v1097
  %vm1099 = vmpackc.low %vm791, %vm759
  %v1100 = vsel %vm1099, 16711935, 0
  %v1101 = vsel %vm1099, 16711935, 0
  %v1102 = vpack.c.b8 %v1101, %v1100
  %vm1103 = vnez %v1102
  %vm1104 = vmpackc.low %vm792, %vm760
  %v1105 = vsel %vm1104, 16711935, 0
  %v1106 = vsel %vm1104, 16711935, 0
  %v1107 = vpack.c.b8 %v1106, %v1105
  %vm1108 = vnez %v1107
  %vm1109 = vmpackc.low %vm793, %vm761
  %v1110 = vsel %vm1109, 16711935, 0
  %v1111 = vsel %vm1109, 16711935, 0
  %v1112 = vpack.c.b8 %v1111, %v1110
  %vm1113 = vnez %v1112
  %vm1114 = vmpackc.low %vm794, %vm762
  %v1115 = vsel %vm1114, 16711935, 0
  %v1116 = vsel %vm1114, 16711935, 0
  %v1117 = vpack.c.b8 %v1116, %v1115
  %vm1118 = vnez %v1117
  %vm1119 = vmpackc.low %vm795, %vm763
  %v1120 = vsel %vm1119, 16711935, 0
  %v1121 = vsel %vm1119, 16711935, 0
  %v1122 = vpack.c.b8 %v1121, %v1120
  %vm1123 = vnez %v1122
  %vm1124 = vmpackc.low %vm796, %vm764
  %v1125 = vsel %vm1124, 16711935, 0
  %v1126 = vsel %vm1124, 16711935, 0
  %v1127 = vpack.c.b8 %v1126, %v1125
  %vm1128 = vnez %v1127
  %vm1129 = vmpackc.low %vm797, %vm765
  %v1130 = vsel %vm1129, 16711935, 0
  %v1131 = vsel %vm1129, 16711935, 0
  %v1132 = vpack.c.b8 %v1131, %v1130
  %vm1133 = vnez %v1132
  %vm1134 = vmpackc.low %vm798, %vm766
  %v1135 = vsel %vm1134, 16711935, 0
  %v1136 = vsel %vm1134, 16711935, 0
  %v1137 = vpack.c.b8 %v1136, %v1135
  %vm1138 = vnez %v1137
  %vm1139 = vmpackc.low %vm799, %vm767
  %v1140 = vsel %vm1139, 16711935, 0
  %v1141 = vsel %vm1139, 16711935, 0
  %v1142 = vpack.c.b8 %v1141, %v1140
  %vm1143 = vnez %v1142
  %vm1144 = vmpackc.low %vm800, %vm768
  %v1145 = vsel %vm1144, 16711935, 0
  %v1146 = vsel %vm1144, 16711935, 0
  %v1147 = vpack.c.b8 %v1146, %v1145
  %vm1148 = vnez %v1147
  %vm1149 = vmpackc.low %vm801, %vm769
  %v1150 = vsel %vm1149, 16711935, 0
  %v1151 = vsel %vm1149, 16711935, 0
  %v1152 = vpack.c.b8 %v1151, %v1150
  %vm1153 = vnez %v1152
  %v1154 = vsel %vm998, 16843009, 0
  %v1155 = vsel %vm1003, 16843009, 0
  %v1156 = vsel %vm1008, 16843009, 0
  %v1157 = vsel %vm1013, 16843009, 0
  %v1158 = vsel %vm1018, 16843009, 0
  %v1159 = vsel %vm1023, 16843009, 0
  %v1160 = vsel %vm1028, 16843009, 0
  %v1161 = vsel %vm1033, 16843009, 0
  %v1162 = vsel %vm1038, 16843009, 0
  %v1163 = vsel %vm1043, 16843009, 0
  %v1164 = vsel %vm1048, 16843009, 0
  %v1165 = vsel %vm1053, 16843009, 0
  %v1166 = vsel %vm1058, 16843009, 0
  %v1167 = vsel %vm1063, 16843009, 0
  %v1168 = vsel %vm1068, 16843009, 0
  %v1169 = vsel %vm1073, 16843009, 0
  %v1170 = vsel %vm1078, 16843009, 0
  %v1171 = vsel %vm1083, 16843009, 0
  %v1172 = vsel %vm1088, 16843009, 0
  %v1173 = vsel %vm1093, 16843009, 0
  %v1174 = vsel %vm1098, 16843009, 0
  %v1175 = vsel %vm1103, 16843009, 0
  %v1176 = vsel %vm1108, 16843009, 0
  %v1177 = vsel %vm1113, 16843009, 0
  %v1178 = vsel %vm1118, 16843009, 0
  %v1179 = vsel %vm1123, 16843009, 0
  %v1180 = vsel %vm1128, 16843009, 0
  %v1181 = vsel %vm1133, 16843009, 0
  %v1182 = vsel %vm1138, 16843009, 0
  %v1183 = vsel %vm1143, 16843009, 0
  %v1184 = vsel %vm1148, 16843009, 0
  %v1185 = vsel %vm1153, 16843009, 0
  %v1186 = vunpack.c.0.s8 %v1154
  %v1187 = vunpack.c.0.s8 %v1155
  %v1188 = vunpack.c.0.s8 %v1156
  %v1189 = vunpack.c.0.s8 %v1157
  %v1190 = vunpack.c.0.s8 %v1158
  %v1191 = vunpack.c.0.s8 %v1159
  %v1192 = vunpack.c.0.s8 %v1160
  %v1193 = vunpack.c.0.s8 %v1161
  %v1194 = vunpack.c.0.s8 %v1162
  %v1195 = vunpack.c.0.s8 %v1163
  %v1196 = vunpack.c.0.s8 %v1164
  %v1197 = vunpack.c.0.s8 %v1165
  %v1198 = vunpack.c.0.s8 %v1166
  %v1199 = vunpack.c.0.s8 %v1167
  %v1200 = vunpack.c.0.s8 %v1168
  %v1201 = vunpack.c.0.s8 %v1169
  %v1202 = vunpack.c.0.s8 %v1170
  %v1203 = vunpack.c.0.s8 %v1171
  %v1204 = vunpack.c.0.s8 %v1172
  %v1205 = vunpack.c.0.s8 %v1173
  %v1206 = vunpack.c.0.s8 %v1174
  %v1207 = vunpack.c.0.s8 %v1175
  %v1208 = vunpack.c.0.s8 %v1176
  %v1209 = vunpack.c.0.s8 %v1177
  %v1210 = vunpack.c.0.s8 %v1178
  %v1211 = vunpack.c.0.s8 %v1179
  %v1212 = vunpack.c.0.s8 %v1180
  %v1213 = vunpack.c.0.s8 %v1181
  %v1214 = vunpack.c.0.s8 %v1182
  %v1215 = vunpack.c.0.s8 %v1183
  %v1216 = vunpack.c.0.s8 %v1184
  %v1217 = vunpack.c.0.s8 %v1185
  %v1218 = vunpack.c.1.s8 %v1154
  %v1219 = vunpack.c.1.s8 %v1155
  %v1220 = vunpack.c.1.s8 %v1156
  %v1221 = vunpack.c.1.s8 %v1157
  %v1222 = vunpack.c.1.s8 %v1158
  %v1223 = vunpack.c.1.s8 %v1159
  %v1224 = vunpack.c.1.s8 %v1160
  %v1225 = vunpack.c.1.s8 %v1161
  %v1226 = vunpack.c.1.s8 %v1162
  %v1227 = vunpack.c.1.s8 %v1163
  %v1228 = vunpack.c.1.s8 %v1164
  %v1229 = vunpack.c.1.s8 %v1165
  %v1230 = vunpack.c.1.s8 %v1166
  %v1231 = vunpack.c.1.s8 %v1167
  %v1232 = vunpack.c.1.s8 %v1168
  %v1233 = vunpack.c.1.s8 %v1169
  %v1234 = vunpack.c.1.s8 %v1170
  %v1235 = vunpack.c.1.s8 %v1171
  %v1236 = vunpack.c.1.s8 %v1172
  %v1237 = vunpack.c.1.s8 %v1173
  %v1238 = vunpack.c.1.s8 %v1174
  %v1239 = vunpack.c.1.s8 %v1175
  %v1240 = vunpack.c.1.s8 %v1176
  %v1241 = vunpack.c.1.s8 %v1177
  %v1242 = vunpack.c.1.s8 %v1178
  %v1243 = vunpack.c.1.s8 %v1179
  %v1244 = vunpack.c.1.s8 %v1180
  %v1245 = vunpack.c.1.s8 %v1181
  %v1246 = vunpack.c.1.s8 %v1182
  %v1247 = vunpack.c.1.s8 %v1183
  %v1248 = vunpack.c.1.s8 %v1184
  %v1249 = vunpack.c.1.s8 %v1185
  %v1250 = vpack.c.b16 %v1187, %v1186
  %v1251 = vpack.c.b16 %v1189, %v1188
  %v1252 = vpack.c.b8 %v1251, %v1250
  %v1253 = vpack.c.b16 %v1191, %v1190
  %v1254 = vpack.c.b16 %v1193, %v1192
  %v1255 = vpack.c.b8 %v1254, %v1253
  %v1256 = vpack.c.b16 %v1195, %v1194
  %v1257 = vpack.c.b16 %v1197, %v1196
  %v1258 = vpack.c.b8 %v1257, %v1256
  %v1259 = vpack.c.b16 %v1199, %v1198
  %v1260 = vpack.c.b16 %v1201, %v1200
  %v1261 = vpack.c.b8 %v1260, %v1259
  %v1262 = vpack.c.b16 %v1203, %v1202
  %v1263 = vpack.c.b16 %v1205, %v1204
  %v1264 = vpack.c.b8 %v1263, %v1262
  %v1265 = vpack.c.b16 %v1207, %v1206
  %v1266 = vpack.c.b16 %v1209, %v1208
  %v1267 = vpack.c.b8 %v1266, %v1265
  %v1268 = vpack.c.b16 %v1211, %v1210
  %v1269 = vpack.c.b16 %v1213, %v1212
  %v1270 = vpack.c.b8 %v1269, %v1268
  %v1271 = vpack.c.b16 %v1215, %v1214
  %v1272 = vpack.c.b16 %v1217, %v1216
  %v1273 = vpack.c.b8 %v1272, %v1271
  %v1274 = vpack.c.b16 %v1219, %v1218
  %v1275 = vpack.c.b16 %v1221, %v1220
  %v1276 = vpack.c.b8 %v1275, %v1274
  %v1277 = vpack.c.b16 %v1223, %v1222
  %v1278 = vpack.c.b16 %v1225, %v1224
  %v1279 = vpack.c.b8 %v1278, %v1277
  %v1280 = vpack.c.b16 %v1227, %v1226
  %v1281 = vpack.c.b16 %v1229, %v1228
  %v1282 = vpack.c.b8 %v1281, %v1280
  %v1283 = vpack.c.b16 %v1231, %v1230
  %v1284 = vpack.c.b16 %v1233, %v1232
  %v1285 = vpack.c.b8 %v1284, %v1283
  %v1286 = vpack.c.b16 %v1235, %v1234
  %v1287 = vpack.c.b16 %v1237, %v1236
  %v1288 = vpack.c.b8 %v1287, %v1286
  %v1289 = vpack.c.b16 %v1239, %v1238
  %v1290 = vpack.c.b16 %v1241, %v1240
  %v1291 = vpack.c.b8 %v1290, %v1289
  %v1292 = vpack.c.b16 %v1243, %v1242
  %v1293 = vpack.c.b16 %v1245, %v1244
  %v1294 = vpack.c.b8 %v1293, %v1292
  %v1295 = vpack.c.b16 %v1247, %v1246
  %v1296 = vpack.c.b16 %v1249, %v1248
  %v1297 = vpack.c.b8 %v1296, %v1295
  %1298 = vst [vmem:[%s4] sm:$0xff] %v1252
  %1299 = vst [vmem:[%s4 + $0x8] sm:$0xff] %v1255
  %1300 = vst [vmem:[%s4 + $0x10] sm:$0xff] %v1258
  %1301 = vst [vmem:[%s4 + $0x18] sm:$0xff] %v1261
  %1302 = vst [vmem:[%s4 + $0x20] sm:$0xff] %v1264
  %1303 = vst [vmem:[%s4 + $0x28] sm:$0xff] %v1267
  %1304 = vst [vmem:[%s4 + $0x30] sm:$0xff] %v1270
  %1305 = vst [vmem:[%s4 + $0x38] sm:$0xff] %v1273
  %1306 = vst [vmem:[%s4 + $0x40] sm:$0xff] %v1276
  %1307 = vst [vmem:[%s4 + $0x48] sm:$0xff] %v1279
  %1308 = vst [vmem:[%s4 + $0x50] sm:$0xff] %v1282
  %1309 = vst [vmem:[%s4 + $0x58] sm:$0xff] %v1285
  %1310 = vst [vmem:[%s4 + $0x60] sm:$0xff] %v1288
  %1311 = vst [vmem:[%s4 + $0x68] sm:$0xff] %v1291
  %1312 = vst [vmem:[%s4 + $0x70] sm:$0xff] %v1294
  %1313 = vst [vmem:[%s4 + $0x78] sm:$0xff] %v1297
  // Predicated region
  $region14: #{jkff_forward.1} parent=0 // pred_check
    _
  $region15: #{jkff_forward.1} parent=0 // pred_check_branch
    %1315 = sbr.rel (0) target = $region17
  $region16: #{jkff_forward.1} parent=0 // pred_region
    _
  $region17: #{jkff_forward.1} parent=0 // pred_fallthru
    _
  // Predicated region
  $region18: #{jkff_forward.1} parent=0 // pred_check
    _
  $region19: #{jkff_forward.1} parent=0 // pred_check_branch
    %1317 = sbr.rel (0) target = $region21
  $region20: #{jkff_forward.1} parent=0 // pred_region
    _
  $region21: #{jkff_forward.1} parent=0 // pred_fallthru
    _
  // Predicated region
  $region22: #{jkff_forward.1} parent=0 // pred_check
    _
  $region23: #{jkff_forward.1} parent=0 // pred_check_branch
    %1319 = sbr.rel (0) target = $region25
  $region24: #{jkff_forward.1} parent=0 // pred_region
    _
  $region25: #{jkff_forward.1} parent=0 // pred_fallthru
    _
  // Predicated region
  $region26: #{jkff_forward.1} parent=0 // pred_check
    _
  $region27: #{jkff_forward.1} parent=0 // pred_check_branch
    %1321 = sbr.rel (0) target = $region29
  $region28: #{jkff_forward.1} parent=0 // pred_region
    _
  $region29: #{jkff_forward.1} parent=0 // pred_fallthru
    _

</llo_original>
